<compile_context>
chip_gen: v7x
topology: tpu7x:2x2x1
jax: 0.10.0
libtpu: 0.0.40
codegen_flags: <defaults>
</compile_context>

<pallas_src>
import jax
import jax.numpy as jnp
from jax.experimental import pallas as pl
from jax.experimental.pallas import tpu as pltpu

LANE = 128  # TPU vreg lane width; pad the final output dim to this.


def sarsa_mlp_kernel(x_ref, w1_ref, b1_ref, w2_ref, b2_ref, w3_ref, b3_ref, o_ref):
    # Entire forward pass (3 matmuls + biases + 2 ReLUs) fused in one kernel.
    x = x_ref[...]
    h1 = jnp.dot(x, w1_ref[...], preferred_element_type=jnp.float32) + b1_ref[...]
    h1 = jnp.maximum(h1, 0.0)
    h2 = jnp.dot(h1, w2_ref[...], preferred_element_type=jnp.float32) + b2_ref[...]
    h2 = jnp.maximum(h2, 0.0)
    q = jnp.dot(h2, w3_ref[...], preferred_element_type=jnp.float32) + b3_ref[...]
    # o_ref is (tile_B, 128): lane-dense, unmasked store.
    o_ref[...] = q.astype(o_ref.dtype)


def init_params(key, num_states, num_actions, hidden=32):
    """nn.Linear default init: U(-1/sqrt(fan_in), +1/sqrt(fan_in)).
    Weights stored transposed as (in, out); biases as (1, out) to stay 2-D."""
    def linear(k, fan_in, fan_out):
        kw, kb = jax.random.split(k)
        bound = 1.0 / jnp.sqrt(fan_in)
        w = jax.random.uniform(kw, (fan_in, fan_out), jnp.float32, -bound, bound)
        b = jax.random.uniform(kb, (1, fan_out), jnp.float32, -bound, bound)
        return w, b

    k1, k2, k3 = jax.random.split(key, 3)
    w1, b1 = linear(k1, num_states, hidden)
    w2, b2 = linear(k2, hidden, hidden)
    w3, b3 = linear(k3, hidden, num_actions)
    return {"w1": w1, "b1": b1, "w2": w2, "b2": b2, "w3": w3, "b3": b3}


def _pad_last_to_lane(a):
    pad = LANE - a.shape[-1]
    if pad <= 0:
        return a
    return jnp.pad(a, ((0, 0), (0, pad)))


def prepare_params(params):
    """One-time prep: zero-pad the final layer to a lane-dense (…, 128) slab so
    the kernel's output store is unmasked.  Zero-padded columns produce zero Q
    entries that the wrapper slices away."""
    p = dict(params)
    p["w3"] = _pad_last_to_lane(params["w3"])
    p["b3"] = _pad_last_to_lane(params["b3"])
    return p


def sarsa_forward(x, padded_params, num_actions, *, batch_block=None):
    """x: (B, num_states) f32.  padded_params: output of prepare_params().
    batch_block: optional batch tile size for large B (multiple of 8, must
    divide B); enables a 'parallel' batch grid axis (2 TCs on v7x)."""
    w1, b1 = padded_params["w1"], padded_params["b1"]
    w2, b2 = padded_params["w2"], padded_params["b2"]
    w3, b3 = padded_params["w3"], padded_params["b3"]
    B, num_states = x.shape
    out_lanes = w3.shape[1]  # 128 after padding
    out_shape = jax.ShapeDtypeStruct((B, out_lanes), jnp.float32)

    use_grid = batch_block is not None and B > batch_block and B % batch_block == 0

    if not use_grid:
        # Micro-kernel path: no grid, everything resident in VMEM, single shot.
        vmem = pl.BlockSpec(memory_space=pltpu.MemorySpace.VMEM)
        q_pad = pl.pallas_call(
            sarsa_mlp_kernel,
            out_shape=out_shape,
            in_specs=[vmem] * 7,
            out_specs=vmem,
        )(x, w1, b1, w2, b2, w3, b3)
    else:
        # Large-batch path: tile the batch axis; weights are re-used (same
        # block) every step. 'parallel' lets v7x split the grid across its
        # two TensorCores.
        x_map = lambda i: (i, 0)
        w_map = lambda i: (0, 0)
        q_pad = pl.pallas_call(
            sarsa_mlp_kernel,
            out_shape=out_shape,
            grid=(B // batch_block,),
            in_specs=[
                pl.BlockSpec((batch_block, num_states), x_map),
                pl.BlockSpec(w1.shape, w_map), pl.BlockSpec(b1.shape, w_map),
                pl.BlockSpec(w2.shape, w_map), pl.BlockSpec(b2.shape, w_map),
                pl.BlockSpec(w3.shape, w_map), pl.BlockSpec(b3.shape, w_map),
            ],
            out_specs=pl.BlockSpec((batch_block, out_lanes), x_map),
            compiler_params=pltpu.CompilerParams(
                dimension_semantics=("parallel",)),
        )(x, w1, b1, w2, b2, w3, b3)

    # Slice the lane padding away in the wrapper (cheap XLA slice).
    return q_pad[:, :num_actions]


def reference_forward(x, p):
    h1 = jnp.maximum(x @ p["w1"] + p["b1"], 0.0)
    h2 = jnp.maximum(h1 @ p["w2"] + p["b2"], 0.0)
    return h2 @ p["w3"] + p["b3"]


if __name__ == "__main__":
    # CartPole-v1: num_states=4, num_actions=2.
    num_states, num_actions, hidden = 4, 2, 32
    key = jax.random.PRNGKey(0)
    k_params, k_x_small, k_x_big = jax.random.split(key, 3)

    params = init_params(k_params, num_states, num_actions, hidden)
    padded = prepare_params(params)

    # Small per-step batch (no-grid micro-kernel path).
    x_small = jax.random.normal(k_x_small, (8, num_states), jnp.float32)
    q_small = jax.block_until_ready(sarsa_forward(x_small, padded, num_actions))
    q_small_ref = reference_forward(x_small, params)
    assert q_small.shape == (8, num_actions)
    assert jnp.allclose(q_small, q_small_ref, atol=1e-5, rtol=1e-5)

    # Batched path (replay-buffer style): grid over batch, 'parallel' axis.
    x_big = jax.random.normal(k_x_big, (256, num_states), jnp.float32)
    q_big = jax.block_until_ready(
        sarsa_forward(x_big, padded, num_actions, batch_block=128))
    q_big_ref = reference_forward(x_big, params)
    assert q_big.shape == (256, num_actions)
    assert jnp.allclose(q_big, q_big_ref, atol=1e-5, rtol=1e-5)

    # TODO(synk): act()'s epsilon-greedy sampling / argmax stays host-side; only
    # the deterministic forward pass is a kernel.
    print("KERNEL_OK")
</pallas_src>

<mosaic_0001>
module attributes {stable_mosaic.version = 11 : i64} {
  func.func @sarsa_mlp_kernel(%arg0: memref<8x4xf32, #tpu.memory_space<vmem>>, %arg1: memref<4x32xf32, #tpu.memory_space<vmem>>, %arg2: memref<1x32xf32, #tpu.memory_space<vmem>>, %arg3: memref<32x32xf32, #tpu.memory_space<vmem>>, %arg4: memref<1x32xf32, #tpu.memory_space<vmem>>, %arg5: memref<32x128xf32, #tpu.memory_space<vmem>>, %arg6: memref<1x128xf32, #tpu.memory_space<vmem>>, %arg7: memref<8x128xf32, #tpu.memory_space<vmem>>) attributes {dimension_semantics = [], scalar_prefetch = 0 : i64, scratch_operands = 0 : i64, tpu.core_type = #tpu.core_type<tc>} {
    %c0 = arith.constant 0 : index
    %c0_0 = arith.constant 0 : index
    %0 = vector.load %arg0[%c0, %c0_0] : memref<8x4xf32, #tpu.memory_space<vmem>>, vector<8x4xf32>
    %c0_1 = arith.constant 0 : index
    %c0_2 = arith.constant 0 : index
    %1 = vector.load %arg1[%c0_1, %c0_2] : memref<4x32xf32, #tpu.memory_space<vmem>>, vector<4x32xf32>
    %cst = arith.constant dense<0.000000e+00> : vector<8x32xf32>
    %2 = tpu.matmul %0, %1, %cst {dimension_numbers = #tpu.dot_dimension_numbers<[1], [0], [0], [1], [0, 0, 1, 1], [], []>} : vector<8x4xf32>, vector<4x32xf32>, vector<8x32xf32> -> vector<8x32xf32>
    %c0_3 = arith.constant 0 : index
    %c0_4 = arith.constant 0 : index
    %3 = vector.load %arg2[%c0_3, %c0_4] : memref<1x32xf32, #tpu.memory_space<vmem>>, vector<1x32xf32>
    %4 = vector.broadcast %3 : vector<1x32xf32> to vector<8x32xf32>
    %5 = arith.addf %2, %4 : vector<8x32xf32>
    %cst_5 = arith.constant 0.000000e+00 : f32
    %6 = vector.broadcast %cst_5 : f32 to vector<8x32xf32>
    %7 = arith.maximumf %5, %6 : vector<8x32xf32>
    %c0_6 = arith.constant 0 : index
    %c0_7 = arith.constant 0 : index
    %8 = vector.load %arg3[%c0_6, %c0_7] : memref<32x32xf32, #tpu.memory_space<vmem>>, vector<32x32xf32>
    %cst_8 = arith.constant dense<0.000000e+00> : vector<8x32xf32>
    %9 = tpu.matmul %7, %8, %cst_8 {dimension_numbers = #tpu.dot_dimension_numbers<[1], [0], [0], [1], [0, 0, 1, 1], [], []>} : vector<8x32xf32>, vector<32x32xf32>, vector<8x32xf32> -> vector<8x32xf32>
    %c0_9 = arith.constant 0 : index
    %c0_10 = arith.constant 0 : index
    %10 = vector.load %arg4[%c0_9, %c0_10] : memref<1x32xf32, #tpu.memory_space<vmem>>, vector<1x32xf32>
    %11 = vector.broadcast %10 : vector<1x32xf32> to vector<8x32xf32>
    %12 = arith.addf %9, %11 : vector<8x32xf32>
    %cst_11 = arith.constant 0.000000e+00 : f32
    %13 = vector.broadcast %cst_11 : f32 to vector<8x32xf32>
    %14 = arith.maximumf %12, %13 : vector<8x32xf32>
    %c0_12 = arith.constant 0 : index
    %c0_13 = arith.constant 0 : index
    %15 = vector.load %arg5[%c0_12, %c0_13] : memref<32x128xf32, #tpu.memory_space<vmem>>, vector<32x128xf32>
    %cst_14 = arith.constant dense<0.000000e+00> : vector<8x128xf32>
    %16 = tpu.matmul %14, %15, %cst_14 {dimension_numbers = #tpu.dot_dimension_numbers<[1], [0], [0], [1], [0, 0, 1, 1], [], []>} : vector<8x32xf32>, vector<32x128xf32>, vector<8x128xf32> -> vector<8x128xf32>
    %c0_15 = arith.constant 0 : index
    %c0_16 = arith.constant 0 : index
    %17 = vector.load %arg6[%c0_15, %c0_16] : memref<1x128xf32, #tpu.memory_space<vmem>>, vector<1x128xf32>
    %18 = vector.broadcast %17 : vector<1x128xf32> to vector<8x128xf32>
    %19 = arith.addf %16, %18 : vector<8x128xf32>
    %c0_17 = arith.constant 0 : index
    %c0_18 = arith.constant 0 : index
    %20 = vector.load %arg7[%c0_17, %c0_18] : memref<8x128xf32, #tpu.memory_space<vmem>>, vector<8x128xf32>
    tpu.vector_store %arg7[%c0_17, %c0_18], %19 {strides = array<i32>} : memref<8x128xf32, #tpu.memory_space<vmem>>, vector<8x128xf32>,
    return
  }
}

</mosaic_0001>

<llo_original>
// kernel: tpu_custom_call.1
$region0: #{tpu_custom_call.1}
  #allocation0 [shape = 'u32[]', space=smem, size = 0x4, offset = 0x4, fixed_abs, tag = 'smem constant byte address 0x4 - core index']
  #allocation1 [shape = 'u32[144,128]{1,0:T(1,128)}', space=vmem, size = 0x12000, scoped, tag = 'internal scratch']
  %s0 = inlined_call_operand.vmem [shape: f32[8,4], index: 0, kind: input, shape index: {}]
  %s1 = inlined_call_operand.vmem [shape: f32[4,32], index: 1, kind: input, shape index: {}]
  %s2 = inlined_call_operand.vmem [shape: f32[1,32], index: 2, kind: input, shape index: {}]
  %s3 = inlined_call_operand.hbm [shape: f32[32,32], index: 3, kind: input, shape index: {}]
  %s4 = inlined_call_operand.vmem [shape: f32[1,32], index: 4, kind: input, shape index: {}]
  %s5 = inlined_call_operand.hbm [shape: f32[32,128], index: 5, kind: input, shape index: {}]
  %s6 = inlined_call_operand.vmem [shape: f32[1,128], index: 6, kind: input, shape index: {}]
  %s7 = inlined_call_operand.hbm [shape: f32[8,128], index: 7, kind: output, shape index: {}]
  %s8 = sld [smem:[#allocation0]]
  $region46: #{tpu_custom_call.1} parent=0
    _
  %s10 = ssub.s32 1, %s8
  %s11 = scalar_select 0, %s10, %s8
  $region1: #{tpu_custom_call.1} parent=0
    #allocation2 [shape = 'u8[16384]{0}', space=vmem, size = 0x4000, scoped, tag = 'input window, operand 3, single buffered']
    #allocation3 [shape = 's32[1]{0}', space=sflag, size = 0x4, scoped, tag = 'scoped memory for tpu_custom_call.1']
    #allocation4 [shape = 's32[1]{0}', space=sflag, size = 0x4, scoped, tag = 'scoped memory for tpu_custom_call.1']
    #allocation5 [shape = 'u8[16384]{0}', space=vmem, size = 0x4000, scoped, tag = 'input window, operand 5, single buffered']
    #allocation6 [shape = 's32[1]{0}', space=sflag, size = 0x4, scoped, tag = 'scoped memory for tpu_custom_call.1']
    #allocation7 [shape = 'u8[4096]{0}', space=vmem, size = 0x1000, scoped, tag = 'output window, operand 0, single buffered']
    %12 = vsyncpa [#allocation3], 0
    %13 = vsyncpa [#allocation6], 0
    %14 = vsyncpa [#allocation4], 0
    // Predicated region
    $region2: #{tpu_custom_call.1} parent=1 // pred_check
      _
    $region3: #{tpu_custom_call.1} parent=1 // pred_check_branch
      %16 = sbr.rel (0) target = $region5
    $region4: #{tpu_custom_call.1} parent=1 // pred_region
      _
    $region5: #{tpu_custom_call.1} parent=1 // pred_fallthru
      _
    // Predicated region
    $region6: #{tpu_custom_call.1} parent=1 // pred_check
      _
    $region7: #{tpu_custom_call.1} parent=1 // pred_check_branch
      %18 = sbr.rel (0) target = $region9
    $region8: #{tpu_custom_call.1} parent=1 // pred_region
      _
    $region9: #{tpu_custom_call.1} parent=1 // pred_fallthru
      _
    // Predicated region
    $region10: #{tpu_custom_call.1} parent=1 // pred_check
      _
    $region11: #{tpu_custom_call.1} parent=1 // pred_check_branch
      %20 = sbr.rel (0) target = $region13
    $region12: #{tpu_custom_call.1} parent=1 // pred_region
      _
    $region13: #{tpu_custom_call.1} parent=1 // pred_fallthru
      _
    // Predicated region
    $region14: #{tpu_custom_call.1} parent=1 // pred_check
      _
    $region15: #{tpu_custom_call.1} parent=1 // pred_check_branch
      %22 = sbr.rel (0) target = $region17
    $region16: #{tpu_custom_call.1} parent=1 // pred_region
      %s24 = ssub.s32 512, 512
      %25 = vsyncadd [#allocation3], %s24
      %s26 = sshll.u32 [#allocation2], 4
      %s27 = int_to_ptr.vmem [resolvable:$true] %s26
      %32 = dma.hbm_to_vmem [thread:$0]  %s3, 512, %s27, [#allocation3], 128, 128, 8
    $region17: #{tpu_custom_call.1} parent=1 // pred_fallthru
      _
    // Predicated region
    $region18: #{tpu_custom_call.1} parent=1 // pred_check
      _
    $region19: #{tpu_custom_call.1} parent=1 // pred_check_branch
      %34 = sbr.rel (0) target = $region21
    $region20: #{tpu_custom_call.1} parent=1 // pred_region
      _
    $region21: #{tpu_custom_call.1} parent=1 // pred_fallthru
      _
    // Predicated region
    $region22: #{tpu_custom_call.1} parent=1 // pred_check
      _
    $region23: #{tpu_custom_call.1} parent=1 // pred_check_branch
      %36 = sbr.rel (0) target = $region25
    $region24: #{tpu_custom_call.1} parent=1 // pred_region
      %s38 = ssub.s32 512, 512
      %39 = vsyncadd [#allocation6], %s38
      %s40 = sshll.u32 [#allocation5], 4
      %s41 = int_to_ptr.vmem [resolvable:$true] %s40
      %46 = dma.hbm_to_vmem [thread:$0]  %s5, 512, %s41, [#allocation6], 128, 128, 8
    $region25: #{tpu_custom_call.1} parent=1 // pred_fallthru
      _
    // Predicated region
    $region26: #{tpu_custom_call.1} parent=1 // pred_check
      _
    $region27: #{tpu_custom_call.1} parent=1 // pred_check_branch
      %48 = sbr.rel (0) target = $region29
    $region28: #{tpu_custom_call.1} parent=1 // pred_region
      _
    $region29: #{tpu_custom_call.1} parent=1 // pred_fallthru
      _
    // Predicated region
    $region30: #{tpu_custom_call.1} parent=1 // pred_check
      _
    $region31: #{tpu_custom_call.1} parent=1 // pred_check_branch
      %50 = sbr.rel (0) target = $region33
    $region32: #{tpu_custom_call.1} parent=1 // pred_region
      %51 = dma.done [#allocation3], 512
    $region33: #{tpu_custom_call.1} parent=1 // pred_fallthru
      _
    // Predicated region
    $region34: #{tpu_custom_call.1} parent=1 // pred_check
      _
    $region35: #{tpu_custom_call.1} parent=1 // pred_check_branch
      %53 = sbr.rel (0) target = $region37
    $region36: #{tpu_custom_call.1} parent=1 // pred_region
      %54 = dma.done [#allocation6], 512
    $region37: #{tpu_custom_call.1} parent=1 // pred_fallthru
      _
    %v55 = vld [vmem:[%s0] sm:$0xff]
    %v56 = vld [vmem:[%s1] sm:$0xf]
    %v57 = vld [vmem:[%s2] sm:$0x1]
    %v59 = vlaneseq
    %v60 = vshrl.u32 %v59, 7
    %v61 = vsub.s32 0, %v60
    %v62 = vrot.slane %v57, %v61
    %vm64 = vcmask 31744
    %v66 = vsel %vm64, %v55, 0
    %vm68 = vcmask 1043456
    %v70 = vsel %vm68, %v56, 0
    %72 = vmatprep.subr.mxu0 0.0
    %73 = vmatpush1.msra.mxu0 %v70
    %74 = vmatprep.subr.mxu0 0.0
    %75 = vmatpush1.msra.mxu0 0.0
    %76 = vmatprep.subr.mxu0 0.0
    %77 = vmatpush1.msra.mxu0 0.0
    %78 = vmatprep.subr.mxu0 0.0
    %79 = vmatpush1.msra.mxu0 0.0
    %80 = vmatprep.subr.mxu0 0.0
    %81 = vmatpush1.msra.mxu0 0.0
    %82 = vmatprep.subr.mxu0 0.0
    %83 = vmatpush1.msra.mxu0 0.0
    %84 = vmatprep.subr.mxu0 0.0
    %85 = vmatpush1.msra.mxu0 0.0
    %86 = vmatprep.subr.mxu0 0.0
    %87 = vmatpush1.msra.mxu0 0.0
    %88 = vmatprep.subr.mxu0 0.0
    %89 = vmatpush1.msra.mxu0 0.0
    %90 = vmatprep.subr.mxu0 0.0
    %91 = vmatpush1.msra.mxu0 0.0
    %92 = vmatprep.subr.mxu0 0.0
    %93 = vmatpush1.msra.mxu0 0.0
    %94 = vmatprep.subr.mxu0 0.0
    %95 = vmatpush1.msra.mxu0 0.0
    %96 = vmatprep.subr.mxu0 0.0
    %97 = vmatpush1.msra.mxu0 0.0
    %98 = vmatprep.subr.mxu0 0.0
    %99 = vmatpush1.msra.mxu0 0.0
    %100 = vmatprep.subr.mxu0 0.0
    %101 = vmatpush1.msra.mxu0 0.0
    %102 = vmatprep.subr.mxu0 0.0
    %103 = vmatpush1.msra.mxu0 0.0
    %104 = vmatprep.subr.mxu0 0.0
    %105 = vmatpush1.msra.mxu0 0.0
    %106 = vmatprep.subr.mxu0 0.0
    %107 = vmatpush1.msra.mxu0 0.0
    %108 = vmatprep.subr.mxu0 0.0
    %109 = vmatpush1.msra.mxu0 0.0
    %110 = vmatprep.subr.mxu0 0.0
    %111 = vmatpush1.msra.mxu0 0.0
    %112 = vmatprep.subr.mxu0 0.0
    %113 = vmatpush1.msra.mxu0 0.0
    %114 = vmatprep.subr.mxu0 0.0
    %115 = vmatpush1.msra.mxu0 0.0
    %116 = vmatprep.subr.mxu0 0.0
    %117 = vmatpush1.msra.mxu0 0.0
    %118 = vmatprep.subr.mxu0 0.0
    %119 = vmatpush1.msra.mxu0 0.0
    %120 = vmatprep.subr.mxu0 0.0
    %121 = vmatpush1.msra.mxu0 0.0
    %122 = vmatprep.subr.mxu0 0.0
    %123 = vmatpush1.msra.mxu0 0.0
    %124 = vmatprep.subr.mxu0 0.0
    %125 = vmatpush1.msra.mxu0 0.0
    %126 = vmatprep.subr.mxu0 0.0
    %127 = vmatpush1.msra.mxu0 0.0
    %128 = vmatprep.subr.mxu0 0.0
    %129 = vmatpush1.msra.mxu0 0.0
    %130 = vmatprep.subr.mxu0 0.0
    %131 = vmatpush1.msra.mxu0 0.0
    %132 = vmatprep.subr.mxu0 0.0
    %133 = vmatpush1.msra.mxu0 0.0
    %134 = vmatprep.subr.mxu0 0.0
    %135 = vmatpush1.msra.mxu0 0.0
    %136 = vmatprep.mubr.f32.mxu0 0.0
    %137 = vmatmul.mubr.f32.gmra.mrb[0].mxu0 %v66
    %v138 = vpop.f32.mrb[0].mxu0
    %v139 = vadd.f32 %v62, %v138
    %v140 = vpop.f32.mrb[0].mxu0
    %141 = vdwg.mxu0
    %v142 = vmax.f32 %v139, 0.0
    %v143 = vld [vmem:[#allocation2] sm:$0xff]
    %v144 = vld [vmem:[#allocation2 + $0x8] sm:$0xff]
    %v145 = vld [vmem:[#allocation2 + $0x10] sm:$0xff]
    %v146 = vld [vmem:[#allocation2 + $0x18] sm:$0xff]
    %v147 = vld [vmem:[%s4] sm:$0x1]
    %v149 = vlaneseq
    %v150 = vshrl.u32 %v149, 7
    %v151 = vsub.s32 0, %v150
    %v152 = vrot.slane %v147, %v151
    %vm154 = vcmask 261120
    %v156 = vsel %vm154, %v142, 0
    %158 = vmatprep.subr.mxu0 0.0
    %159 = vmatpush1.msra.mxu0 %v143
    %160 = vmatprep.subr.mxu0 0.0
    %161 = vmatpush1.msra.mxu0 %v144
    %162 = vmatprep.subr.mxu0 0.0
    %163 = vmatpush1.msra.mxu0 %v145
    %164 = vmatprep.subr.mxu0 0.0
    %165 = vmatpush1.msra.mxu0 %v146
    %166 = vmatprep.subr.mxu0 0.0
    %167 = vmatpush1.msra.mxu0 0.0
    %168 = vmatprep.subr.mxu0 0.0
    %169 = vmatpush1.msra.mxu0 0.0
    %170 = vmatprep.subr.mxu0 0.0
    %171 = vmatpush1.msra.mxu0 0.0
    %172 = vmatprep.subr.mxu0 0.0
    %173 = vmatpush1.msra.mxu0 0.0
    %174 = vmatprep.subr.mxu0 0.0
    %175 = vmatpush1.msra.mxu0 0.0
    %176 = vmatprep.subr.mxu0 0.0
    %177 = vmatpush1.msra.mxu0 0.0
    %178 = vmatprep.subr.mxu0 0.0
    %179 = vmatpush1.msra.mxu0 0.0
    %180 = vmatprep.subr.mxu0 0.0
    %181 = vmatpush1.msra.mxu0 0.0
    %182 = vmatprep.subr.mxu0 0.0
    %183 = vmatpush1.msra.mxu0 0.0
    %184 = vmatprep.subr.mxu0 0.0
    %185 = vmatpush1.msra.mxu0 0.0
    %186 = vmatprep.subr.mxu0 0.0
    %187 = vmatpush1.msra.mxu0 0.0
    %188 = vmatprep.subr.mxu0 0.0
    %189 = vmatpush1.msra.mxu0 0.0
    %190 = vmatprep.subr.mxu0 0.0
    %191 = vmatpush1.msra.mxu0 0.0
    %192 = vmatprep.subr.mxu0 0.0
    %193 = vmatpush1.msra.mxu0 0.0
    %194 = vmatprep.subr.mxu0 0.0
    %195 = vmatpush1.msra.mxu0 0.0
    %196 = vmatprep.subr.mxu0 0.0
    %197 = vmatpush1.msra.mxu0 0.0
    %198 = vmatprep.subr.mxu0 0.0
    %199 = vmatpush1.msra.mxu0 0.0
    %200 = vmatprep.subr.mxu0 0.0
    %201 = vmatpush1.msra.mxu0 0.0
    %202 = vmatprep.subr.mxu0 0.0
    %203 = vmatpush1.msra.mxu0 0.0
    %204 = vmatprep.subr.mxu0 0.0
    %205 = vmatpush1.msra.mxu0 0.0
    %206 = vmatprep.subr.mxu0 0.0
    %207 = vmatpush1.msra.mxu0 0.0
    %208 = vmatprep.subr.mxu0 0.0
    %209 = vmatpush1.msra.mxu0 0.0
    %210 = vmatprep.subr.mxu0 0.0
    %211 = vmatpush1.msra.mxu0 0.0
    %212 = vmatprep.subr.mxu0 0.0
    %213 = vmatpush1.msra.mxu0 0.0
    %214 = vmatprep.subr.mxu0 0.0
    %215 = vmatpush1.msra.mxu0 0.0
    %216 = vmatprep.subr.mxu0 0.0
    %217 = vmatpush1.msra.mxu0 0.0
    %218 = vmatprep.subr.mxu0 0.0
    %219 = vmatpush1.msra.mxu0 0.0
    %220 = vmatprep.subr.mxu0 0.0
    %221 = vmatpush1.msra.mxu0 0.0
    %222 = vmatprep.mubr.f32.mxu0 0.0
    %223 = vmatmul.mubr.f32.gmra.mrb[0].mxu0 %v156
    %v224 = vpop.f32.mrb[0].mxu0
    %v225 = vadd.f32 %v152, %v224
    %v226 = vpop.f32.mrb[0].mxu0
    %227 = vdwg.mxu0
    %v228 = vmax.f32 %v225, 0.0
    %v229 = vld [vmem:[#allocation5] sm:$0xff]
    %v230 = vld [vmem:[#allocation5 + $0x8] sm:$0xff]
    %v231 = vld [vmem:[#allocation5 + $0x10] sm:$0xff]
    %v232 = vld [vmem:[#allocation5 + $0x18] sm:$0xff]
    %v233 = vld [vmem:[%s6] sm:$0x1]
    %v235 = vlaneseq
    %v236 = vshrl.u32 %v235, 7
    %v237 = vsub.s32 0, %v236
    %v238 = vrot.slane %v233, %v237
    %v241 = vsel %vm154, %v228, 0
    %243 = vmatprep.subr.mxu0 0.0
    %244 = vmatpush1.msra.mxu0 %v229
    %245 = vmatprep.subr.mxu0 0.0
    %246 = vmatpush1.msra.mxu0 %v230
    %247 = vmatprep.subr.mxu0 0.0
    %248 = vmatpush1.msra.mxu0 %v231
    %249 = vmatprep.subr.mxu0 0.0
    %250 = vmatpush1.msra.mxu0 %v232
    %251 = vmatprep.subr.mxu0 0.0
    %252 = vmatpush1.msra.mxu0 0.0
    %253 = vmatprep.subr.mxu0 0.0
    %254 = vmatpush1.msra.mxu0 0.0
    %255 = vmatprep.subr.mxu0 0.0
    %256 = vmatpush1.msra.mxu0 0.0
    %257 = vmatprep.subr.mxu0 0.0
    %258 = vmatpush1.msra.mxu0 0.0
    %259 = vmatprep.subr.mxu0 0.0
    %260 = vmatpush1.msra.mxu0 0.0
    %261 = vmatprep.subr.mxu0 0.0
    %262 = vmatpush1.msra.mxu0 0.0
    %263 = vmatprep.subr.mxu0 0.0
    %264 = vmatpush1.msra.mxu0 0.0
    %265 = vmatprep.subr.mxu0 0.0
    %266 = vmatpush1.msra.mxu0 0.0
    %267 = vmatprep.subr.mxu0 0.0
    %268 = vmatpush1.msra.mxu0 0.0
    %269 = vmatprep.subr.mxu0 0.0
    %270 = vmatpush1.msra.mxu0 0.0
    %271 = vmatprep.subr.mxu0 0.0
    %272 = vmatpush1.msra.mxu0 0.0
    %273 = vmatprep.subr.mxu0 0.0
    %274 = vmatpush1.msra.mxu0 0.0
    %275 = vmatprep.subr.mxu0 0.0
    %276 = vmatpush1.msra.mxu0 0.0
    %277 = vmatprep.subr.mxu0 0.0
    %278 = vmatpush1.msra.mxu0 0.0
    %279 = vmatprep.subr.mxu0 0.0
    %280 = vmatpush1.msra.mxu0 0.0
    %281 = vmatprep.subr.mxu0 0.0
    %282 = vmatpush1.msra.mxu0 0.0
    %283 = vmatprep.subr.mxu0 0.0
    %284 = vmatpush1.msra.mxu0 0.0
    %285 = vmatprep.subr.mxu0 0.0
    %286 = vmatpush1.msra.mxu0 0.0
    %287 = vmatprep.subr.mxu0 0.0
    %288 = vmatpush1.msra.mxu0 0.0
    %289 = vmatprep.subr.mxu0 0.0
    %290 = vmatpush1.msra.mxu0 0.0
    %291 = vmatprep.subr.mxu0 0.0
    %292 = vmatpush1.msra.mxu0 0.0
    %293 = vmatprep.subr.mxu0 0.0
    %294 = vmatpush1.msra.mxu0 0.0
    %295 = vmatprep.subr.mxu0 0.0
    %296 = vmatpush1.msra.mxu0 0.0
    %297 = vmatprep.subr.mxu0 0.0
    %298 = vmatpush1.msra.mxu0 0.0
    %299 = vmatprep.subr.mxu0 0.0
    %300 = vmatpush1.msra.mxu0 0.0
    %301 = vmatprep.subr.mxu0 0.0
    %302 = vmatpush1.msra.mxu0 0.0
    %303 = vmatprep.subr.mxu0 0.0
    %304 = vmatpush1.msra.mxu0 0.0
    %305 = vmatprep.subr.mxu0 0.0
    %306 = vmatpush1.msra.mxu0 0.0
    %307 = vmatprep.mubr.f32.mxu0 0.0
    %308 = vmatmul.mubr.f32.gmra.mrb[0].mxu0 %v241
    %v309 = vpop.f32.mrb[0].mxu0
    %v310 = vadd.f32 %v238, %v309
    %v311 = vpop.f32.mrb[0].mxu0
    %312 = vdwg.mxu0
    %313 = vst [vmem:[#allocation7] sm:$0xff] %v310
    // Predicated region
    $region38: #{tpu_custom_call.1} parent=1 // pred_check
      _
    $region39: #{tpu_custom_call.1} parent=1 // pred_check_branch
      %315 = sbr.rel (0) target = $region41
    $region40: #{tpu_custom_call.1} parent=1 // pred_region
      %s317 = ssub.s32 128, 128
      %318 = vsyncadd [#allocation4], %s317
      %s320 = sshll.u32 [#allocation7], 4
      %s321 = int_to_ptr.vmem [resolvable:$true] %s320
      %323 = dma.vmem_to_hbm [thread:$0]  %s321, 128, %s7, [#allocation4]
    $region41: #{tpu_custom_call.1} parent=1 // pred_fallthru
      _
    // Predicated region
    $region42: #{tpu_custom_call.1} parent=1 // pred_check
      _
    $region43: #{tpu_custom_call.1} parent=1 // pred_check_branch
      %325 = sbr.rel (0) target = $region45
    $region44: #{tpu_custom_call.1} parent=1 // pred_region
      %326 = dma.done [#allocation4], 128
    $region45: #{tpu_custom_call.1} parent=1 // pred_fallthru
      _
    %327 = vsyncpa [#allocation3], 1
    %328 = vsyncpa [#allocation6], 1
    %329 = vsyncpa [#allocation4], 1

</llo_original>
